<compile_context>
chip_gen: v7x
topology: tpu7x:2x2x1
jax: 0.10.0
libtpu: 0.0.40
codegen_flags: <defaults>
</compile_context>

<pallas_src>
import functools

import jax
import jax.numpy as jnp
from jax.experimental import pallas as pl
from jax.experimental.pallas import tpu as pltpu


def _round_up(x, m):
    return (x + m - 1) // m * m


def fused_conv_kernel(x_ref, w_ref, b_ref, o_ref, padded_ref, patches_ref, *,
                      nb, seg, h, w, cin, cout):
    """One batch block of `nb` images.

    x_ref:       (nb, cin, h*w)        unpadded input images (f32)
    w_ref:       (2*cout, 9*cin)       folded weights (bf16); rows [0,cout) =
                                       conv1+conv2, rows [cout,2cout) = conv3
    b_ref:       (2*cout, 1)           folded biases (f32)
    o_ref:       (nb, cout, (h-1)*w)   lane-dense output (1 garbage col / row)
    padded_ref:  (cin, nb*seg + tail)  VMEM: zero-padded, lane-concat images
    patches_ref: (9*cin, nb*seg)       VMEM: im2col slab (bf16)
    """
    hw = h * w
    ltot = patches_ref.shape[1]      # nb * seg
    lout = (h - 1) * w               # per-image output lanes

    # ---- in-kernel zero padding (no jnp.pad HBM pass in the wrapper) --------
    # Per-image segment layout (length `seg`, 128-aligned):
    #   [1 zero][w zeros = top-pad row][row0 row1 ... row(h-1) contiguous][0..]
    # data(r, c) lives at flat index (r+1)*w + (c+1), so the 3x3 tap (i, j) of
    # output position p = hh*w + ww is just the lane shift  s = i*w + j.
    padded_ref[...] = jnp.zeros_like(padded_ref)
    for b in range(nb):
        dst = b * seg + w + 1
        padded_ref[:, dst:dst + hw] = x_ref[b].astype(padded_ref.dtype)

    # Left-halo fix-up: with row-contiguous storage a j==0 tap at output
    # column 0 would read the previous row's last pixel instead of the zero
    # halo.  Mask those lanes (output col 0 <=> (lane % seg) % w == 0).
    lane = jax.lax.broadcasted_iota(jnp.int32, (1, ltot), 1)
    left_edge = ((lane % seg) % w) == 0

    # ---- im2col: 9 lane-shifted windows -> (9*cin, nb*seg) bf16 slab --------
    for i in range(3):
        for j in range(3):
            t = i * 3 + j
            s = i * w + j
            slab = padded_ref[:, s:s + ltot]
            if j == 0:
                slab = jnp.where(left_edge,
                                 jnp.array(0, dtype=slab.dtype), slab)
            patches_ref[t * cin:(t + 1) * cin, :] = slab

    # ---- one MXU matmul for all three fused convs (bf16 in, f32 acc) --------
    y = jnp.dot(w_ref[...], patches_ref[...],
                preferred_element_type=jnp.float32)
    y = y + b_ref[...]                       # (2*cout, ltot) + (2*cout, 1)

    # ---- epilogue: relu(relu(v1+v2) + v3); per-image lane-dense stores ------
    for b in range(nb):
        yb = y[:, b * seg:b * seg + lout]    # 128-aligned start -> cheap slice
        v12 = jnp.maximum(yb[:cout], 0.0)    # folded conv1+conv2 (+ bias)
        o_ref[b] = jnp.maximum(v12 + yb[cout:], 0.0).astype(o_ref.dtype)


@jax.jit
def model_forward(x_nchw, params):
    """x_nchw: (N, 16, H, W) float32.  Returns (N, 16, H-1, W-1) float32."""
    (w1, b1), (w2, b2), (w3, b3) = params
    N, C, H, W = x_nchw.shape
    Ho, Wo = H - 1, W - 1
    Cout = w1.shape[0]

    # Per-image lane segment, 128-aligned so per-image slices need no relayout.
    seg = _round_up(H * W + W + 1, 128)
    tail = _round_up(2 * W + 2, 128)

    # Batch blocking: lane-concatenate `nb` images per grid step; keep grid
    # length 2 when possible so the "parallel" batch axis shards across v7x's
    # two TensorCores.  (pltpu.CORE_PARALLEL is the more explicit knob but
    # plain "parallel" is the portable megacore mechanism.)  VMEM-capped.
    per_img_vmem = (seg * (9 * C * 2 + C * 2 + 2 * Cout * 4)
                    + (H * W + Ho * W) * C * 4 * 2)
    nb = N // 2 if (N % 2 == 0 and N >= 2) else 1
    nb = max(1, min(nb, max(1, (12 * 1024 * 1024) // per_img_vmem)))
    while N % nb != 0:
        nb -= 1
    G = N // nb
    Ltot = nb * seg

    # Fold conv1+conv2 (w12 = w1+w2); embed the 2x2/pad=0 conv3 into the same
    # 3x3 window (its taps land at rows/cols {1,2}) -> one (2*Cout, 9*C) weight.
    w12 = w1 + w2
    w3e = jnp.zeros((Cout, C, 3, 3), w3.dtype).at[:, :, 1:, 1:].set(w3)
    w_comb = jnp.concatenate([w12, w3e], axis=0)                   # (2Cout,C,3,3)
    # Column order (i, j, c) must match the im2col slab built in the kernel.
    w_mat = jnp.transpose(w_comb, (0, 2, 3, 1)).reshape(2 * Cout, 9 * C)
    w_mat = w_mat.astype(jnp.bfloat16)
    b_comb = jnp.concatenate([b1 + b2, b3]).reshape(2 * Cout, 1)
    b_comb = b_comb.astype(jnp.float32)

    xflat = x_nchw.reshape(N, C, H * W)      # free reshape; no pad in HBM

    kernel = functools.partial(fused_conv_kernel, nb=nb, seg=seg,
                               h=H, w=W, cin=C, cout=Cout)

    out_flat = pl.pallas_call(
        kernel,
        out_shape=jax.ShapeDtypeStruct((N, Cout, Ho * W), x_nchw.dtype),
        grid=(G,),
        in_specs=[
            pl.BlockSpec((nb, C, H * W), lambda g: (g, 0, 0)),
            pl.BlockSpec((2 * Cout, 9 * C), lambda g: (0, 0)),
            pl.BlockSpec((2 * Cout, 1), lambda g: (0, 0)),
        ],
        out_specs=pl.BlockSpec((nb, Cout, Ho * W), lambda g: (g, 0, 0)),
        scratch_shapes=[
            pltpu.VMEM((C, Ltot + tail), jnp.bfloat16),   # padded image slab
            pltpu.VMEM((9 * C, Ltot), jnp.bfloat16),      # im2col patches
        ],
        compiler_params=pltpu.CompilerParams(
            dimension_semantics=("parallel",),
            vmem_limit_bytes=32 * 1024 * 1024),
    )(xflat, w_mat, b_comb)

    # Drop the single garbage column per output row; fuses inside this jit.
    return out_flat.reshape(N, Cout, Ho, W)[:, :, :, :Wo]


def _init_conv_params(key, cout, cin, k):
    # deterministic PyTorch-like init: U(-bound, bound), bound = 1/sqrt(fan_in)
    kw, kb = jax.random.split(key)
    fan_in = cin * k * k
    bound = 1.0 / (fan_in ** 0.5)
    w = jax.random.uniform(kw, (cout, cin, k, k), jnp.float32, -bound, bound)
    b = jax.random.uniform(kb, (cout,), jnp.float32, -bound, bound)
    return w, b


def _reference(x_nchw, params):
    (w1, b1), (w2, b2), (w3, b3) = params

    def conv(x, wgt, bias, pad):
        y = jax.lax.conv_general_dilated(
            x, wgt, window_strides=(1, 1),
            padding=[(pad, pad), (pad, pad)],
            dimension_numbers=("NCHW", "OIHW", "NCHW"))
        return y + bias.reshape(1, -1, 1, 1)

    v1 = conv(x_nchw, w1, b1, 1)
    v2 = conv(x_nchw, w2, b2, 1)
    v3 = conv(x_nchw, w3, b3, 0)
    v5 = jnp.maximum(v1 + v2, 0.0)
    Ho, Wo = v3.shape[2], v3.shape[3]
    return jnp.maximum(v5[:, :, :Ho, :Wo] + v3, 0.0)


if __name__ == "__main__":
    key = jax.random.PRNGKey(0)
    kx, k1, k2, k3, kx2 = jax.random.split(key, 5)

    # channels are fixed at 16 by the module's convs
    params = (
        _init_conv_params(k1, 16, 16, 3),
        _init_conv_params(k2, 16, 16, 3),
        _init_conv_params(k3, 16, 16, 2),
    )

    # Main check: small shape consistent with the module.
    N, C, H, W = 2, 16, 16, 16
    x = jax.random.normal(kx, (N, C, H, W), jnp.float32)
    out = jax.block_until_ready(model_forward(x, params))
    ref = _reference(x, params)
    assert out.shape == (N, 16, H - 1, W - 1), out.shape
    assert jnp.allclose(out, ref, atol=3e-2, rtol=3e-2), (
        float(jnp.max(jnp.abs(out - ref))))

    # Second check exercises the batch-blocked path (nb > 1 images per step).
    N2, H2, W2 = 4, 8, 8
    x2 = jax.random.normal(kx2, (N2, C, H2, W2), jnp.float32)
    out2 = jax.block_until_ready(model_forward(x2, params))
    ref2 = _reference(x2, params)
    assert out2.shape == (N2, 16, H2 - 1, W2 - 1), out2.shape
    assert jnp.allclose(out2, ref2, atol=3e-2, rtol=3e-2), (
        float(jnp.max(jnp.abs(out2 - ref2))))

    print("KERNEL_OK")
</pallas_src>

<mosaic_0001>
module attributes {stable_mosaic.version = 11 : i64} {
  func.func @fused_conv_kernel(%arg0: i32, %arg1: memref<1x16x256xf32, #tpu.memory_space<vmem>>, %arg2: memref<32x144xbf16, #tpu.memory_space<vmem>>, %arg3: memref<32x1xf32, #tpu.memory_space<vmem>>, %arg4: memref<1x16x240xf32, #tpu.memory_space<vmem>>, %arg5: memref<16x512xbf16, #tpu.memory_space<vmem>>, %arg6: memref<144x384xbf16, #tpu.memory_space<vmem>>) attributes {dimension_semantics = [#tpu.dimension_semantics<parallel>], iteration_bounds = array<i64: 2>, scalar_prefetch = 0 : i64, scratch_operands = 2 : i64, tpu.core_type = #tpu.core_type<tc>, window_params = [{transform_indices = @transform_0, window_bounds = array<i64: 1, 16, 256>}, {pipeline_mode = #tpu.pipeline_mode<synchronous>, transform_indices = @transform_1, window_bounds = array<i64: 32, 144>}, {pipeline_mode = #tpu.pipeline_mode<synchronous>, transform_indices = @transform_2, window_bounds = array<i64: 32, 1>}, {transform_indices = @transform_3, window_bounds = array<i64: 1, 16, 240>}]} {
    %cst = arith.constant 0.000000e+00 : bf16
    %0 = vector.broadcast %cst : bf16 to vector<16x512xbf16>
    %c0 = arith.constant 0 : index
    %c0_0 = arith.constant 0 : index
    %1 = vector.load %arg5[%c0, %c0_0] : memref<16x512xbf16, #tpu.memory_space<vmem>>, vector<16x512xbf16>
    tpu.vector_store %arg5[%c0, %c0_0], %0 {strides = array<i32>} : memref<16x512xbf16, #tpu.memory_space<vmem>>, vector<16x512xbf16>,
    %c0_1 = arith.constant 0 : index
    %c0_2 = arith.constant 0 : index
    %c0_3 = arith.constant 0 : index
    %2 = vector.load %arg1[%c0_1, %c0_2, %c0_3] : memref<1x16x256xf32, #tpu.memory_space<vmem>>, vector<1x16x256xf32>
    %3 = vector.shape_cast %2 : vector<1x16x256xf32> to vector<16x256xf32>
    %4 = arith.truncf %3 : vector<16x256xf32> to vector<16x256xbf16>
    %c0_4 = arith.constant 0 : index
    %c17 = arith.constant 17 : index
    %5 = vector.load %arg5[%c0_4, %c17] : memref<16x512xbf16, #tpu.memory_space<vmem>>, vector<16x256xbf16>
    tpu.vector_store %arg5[%c0_4, %c17], %4 {strides = array<i32>} : memref<16x512xbf16, #tpu.memory_space<vmem>>, vector<16x256xbf16>,
    %6 = tpu.iota {dimensions = array<i32: 1>} : vector<1x384xi32>
    %c384_i32 = arith.constant 384 : i32
    %c0_i32 = arith.constant 0 : i32
    %7 = arith.cmpi eq, %c384_i32, %c0_i32 : i32
    %c1_i32 = arith.constant 1 : i32
    %8 = arith.select %7, %c1_i32, %c384_i32 : i32
    %9 = vector.broadcast %8 : i32 to vector<1x384xi32>
    %10 = arith.remsi %6, %9 : vector<1x384xi32>
    %c0_i32_5 = arith.constant 0 : i32
    %11 = vector.broadcast %c0_i32_5 : i32 to vector<1x384xi32>
    %12 = arith.cmpi ne, %10, %11 : vector<1x384xi32>
    %c0_i32_6 = arith.constant 0 : i32
    %13 = vector.broadcast %c0_i32_6 : i32 to vector<1x384xi32>
    %14 = arith.cmpi slt, %10, %13 : vector<1x384xi32>
    %c0_i32_7 = arith.constant 0 : i32
    %15 = arith.cmpi slt, %8, %c0_i32_7 : i32
    %16 = vector.broadcast %15 : i1 to vector<1x384xi1>
    %17 = vector.broadcast %16 : vector<1x384xi1> to vector<1x384xi1>
    %18 = arith.xori %14, %17 : vector<1x384xi1>
    %19 = arith.andi %18, %12 : vector<1x384xi1>
    %20 = vector.broadcast %8 : i32 to vector<1x384xi32>
    %21 = arith.addi %10, %20 : vector<1x384xi32>
    %22 = arith.select %19, %21, %10 : vector<1x384xi1>, vector<1x384xi32>
    %c16_i32 = arith.constant 16 : i32
    %c0_i32_8 = arith.constant 0 : i32
    %23 = arith.cmpi eq, %c16_i32, %c0_i32_8 : i32
    %c1_i32_9 = arith.constant 1 : i32
    %24 = arith.select %23, %c1_i32_9, %c16_i32 : i32
    %25 = vector.broadcast %24 : i32 to vector<1x384xi32>
    %26 = arith.remsi %22, %25 : vector<1x384xi32>
    %c0_i32_10 = arith.constant 0 : i32
    %27 = vector.broadcast %c0_i32_10 : i32 to vector<1x384xi32>
    %28 = arith.cmpi ne, %26, %27 : vector<1x384xi32>
    %c0_i32_11 = arith.constant 0 : i32
    %29 = vector.broadcast %c0_i32_11 : i32 to vector<1x384xi32>
    %30 = arith.cmpi slt, %26, %29 : vector<1x384xi32>
    %c0_i32_12 = arith.constant 0 : i32
    %31 = arith.cmpi slt, %24, %c0_i32_12 : i32
    %32 = vector.broadcast %31 : i1 to vector<1x384xi1>
    %33 = vector.broadcast %32 : vector<1x384xi1> to vector<1x384xi1>
    %34 = arith.xori %30, %33 : vector<1x384xi1>
    %35 = arith.andi %34, %28 : vector<1x384xi1>
    %36 = vector.broadcast %24 : i32 to vector<1x384xi32>
    %37 = arith.addi %26, %36 : vector<1x384xi32>
    %38 = arith.select %35, %37, %26 : vector<1x384xi1>, vector<1x384xi32>
    %c0_i32_13 = arith.constant 0 : i32
    %39 = vector.broadcast %c0_i32_13 : i32 to vector<1x384xi32>
    %40 = arith.cmpi eq, %38, %39 : vector<1x384xi32>
    %c0_14 = arith.constant 0 : index
    %c0_15 = arith.constant 0 : index
    %41 = vector.load %arg5[%c0_14, %c0_15] : memref<16x512xbf16, #tpu.memory_space<vmem>>, vector<16x384xbf16>
    %cst_16 = arith.constant 0.000000e+00 : bf16
    %42 = vector.shape_cast %40 : vector<1x384xi1> to vector<1x384xi1>
    %43 = vector.broadcast %42 : vector<1x384xi1> to vector<16x384xi1>
    %44 = vector.broadcast %cst_16 : bf16 to vector<16x384xbf16>
    %45 = arith.select %43, %44, %41 : vector<16x384xi1>, vector<16x384xbf16>
    %c0_17 = arith.constant 0 : index
    %c0_18 = arith.constant 0 : index
    %46 = vector.load %arg6[%c0_17, %c0_18] : memref<144x384xbf16, #tpu.memory_space<vmem>>, vector<16x384xbf16>
    tpu.vector_store %arg6[%c0_17, %c0_18], %45 {strides = array<i32>} : memref<144x384xbf16, #tpu.memory_space<vmem>>, vector<16x384xbf16>,
    %c0_19 = arith.constant 0 : index
    %c1 = arith.constant 1 : index
    %47 = vector.load %arg5[%c0_19, %c1] : memref<16x512xbf16, #tpu.memory_space<vmem>>, vector<16x384xbf16>
    %c16 = arith.constant 16 : index
    %c0_20 = arith.constant 0 : index
    %48 = vector.load %arg6[%c16, %c0_20] : memref<144x384xbf16, #tpu.memory_space<vmem>>, vector<16x384xbf16>
    tpu.vector_store %arg6[%c16, %c0_20], %47 {strides = array<i32>} : memref<144x384xbf16, #tpu.memory_space<vmem>>, vector<16x384xbf16>,
    %c0_21 = arith.constant 0 : index
    %c2 = arith.constant 2 : index
    %49 = vector.load %arg5[%c0_21, %c2] : memref<16x512xbf16, #tpu.memory_space<vmem>>, vector<16x384xbf16>
    %c32 = arith.constant 32 : index
    %c0_22 = arith.constant 0 : index
    %50 = vector.load %arg6[%c32, %c0_22] : memref<144x384xbf16, #tpu.memory_space<vmem>>, vector<16x384xbf16>
    tpu.vector_store %arg6[%c32, %c0_22], %49 {strides = array<i32>} : memref<144x384xbf16, #tpu.memory_space<vmem>>, vector<16x384xbf16>,
    %c0_23 = arith.constant 0 : index
    %c16_24 = arith.constant 16 : index
    %51 = vector.load %arg5[%c0_23, %c16_24] : memref<16x512xbf16, #tpu.memory_space<vmem>>, vector<16x384xbf16>
    %cst_25 = arith.constant 0.000000e+00 : bf16
    %52 = vector.shape_cast %40 : vector<1x384xi1> to vector<1x384xi1>
    %53 = vector.broadcast %52 : vector<1x384xi1> to vector<16x384xi1>
    %54 = vector.broadcast %cst_25 : bf16 to vector<16x384xbf16>
    %55 = arith.select %53, %54, %51 : vector<16x384xi1>, vector<16x384xbf16>
    %c48 = arith.constant 48 : index
    %c0_26 = arith.constant 0 : index
    %56 = vector.load %arg6[%c48, %c0_26] : memref<144x384xbf16, #tpu.memory_space<vmem>>, vector<16x384xbf16>
    tpu.vector_store %arg6[%c48, %c0_26], %55 {strides = array<i32>} : memref<144x384xbf16, #tpu.memory_space<vmem>>, vector<16x384xbf16>,
    %c0_27 = arith.constant 0 : index
    %c17_28 = arith.constant 17 : index
    %57 = vector.load %arg5[%c0_27, %c17_28] : memref<16x512xbf16, #tpu.memory_space<vmem>>, vector<16x384xbf16>
    %c64 = arith.constant 64 : index
    %c0_29 = arith.constant 0 : index
    %58 = vector.load %arg6[%c64, %c0_29] : memref<144x384xbf16, #tpu.memory_space<vmem>>, vector<16x384xbf16>
    tpu.vector_store %arg6[%c64, %c0_29], %57 {strides = array<i32>} : memref<144x384xbf16, #tpu.memory_space<vmem>>, vector<16x384xbf16>,
    %c0_30 = arith.constant 0 : index
    %c18 = arith.constant 18 : index
    %59 = vector.load %arg5[%c0_30, %c18] : memref<16x512xbf16, #tpu.memory_space<vmem>>, vector<16x384xbf16>
    %c80 = arith.constant 80 : index
    %c0_31 = arith.constant 0 : index
    %60 = vector.load %arg6[%c80, %c0_31] : memref<144x384xbf16, #tpu.memory_space<vmem>>, vector<16x384xbf16>
    tpu.vector_store %arg6[%c80, %c0_31], %59 {strides = array<i32>} : memref<144x384xbf16, #tpu.memory_space<vmem>>, vector<16x384xbf16>,
    %c0_32 = arith.constant 0 : index
    %c32_33 = arith.constant 32 : index
    %61 = vector.load %arg5[%c0_32, %c32_33] : memref<16x512xbf16, #tpu.memory_space<vmem>>, vector<16x384xbf16>
    %cst_34 = arith.constant 0.000000e+00 : bf16
    %62 = vector.shape_cast %40 : vector<1x384xi1> to vector<1x384xi1>
    %63 = vector.broadcast %62 : vector<1x384xi1> to vector<16x384xi1>
    %64 = vector.broadcast %cst_34 : bf16 to vector<16x384xbf16>
    %65 = arith.select %63, %64, %61 : vector<16x384xi1>, vector<16x384xbf16>
    %c96 = arith.constant 96 : index
    %c0_35 = arith.constant 0 : index
    %66 = vector.load %arg6[%c96, %c0_35] : memref<144x384xbf16, #tpu.memory_space<vmem>>, vector<16x384xbf16>
    tpu.vector_store %arg6[%c96, %c0_35], %65 {strides = array<i32>} : memref<144x384xbf16, #tpu.memory_space<vmem>>, vector<16x384xbf16>,
    %c0_36 = arith.constant 0 : index
    %c33 = arith.constant 33 : index
    %67 = vector.load %arg5[%c0_36, %c33] : memref<16x512xbf16, #tpu.memory_space<vmem>>, vector<16x384xbf16>
    %c112 = arith.constant 112 : index
    %c0_37 = arith.constant 0 : index
    %68 = vector.load %arg6[%c112, %c0_37] : memref<144x384xbf16, #tpu.memory_space<vmem>>, vector<16x384xbf16>
    tpu.vector_store %arg6[%c112, %c0_37], %67 {strides = array<i32>} : memref<144x384xbf16, #tpu.memory_space<vmem>>, vector<16x384xbf16>,
    %c0_38 = arith.constant 0 : index
    %c34 = arith.constant 34 : index
    %69 = vector.load %arg5[%c0_38, %c34] : memref<16x512xbf16, #tpu.memory_space<vmem>>, vector<16x384xbf16>
    %c128 = arith.constant 128 : index
    %c0_39 = arith.constant 0 : index
    %70 = vector.load %arg6[%c128, %c0_39] : memref<144x384xbf16, #tpu.memory_space<vmem>>, vector<16x384xbf16>
    tpu.vector_store %arg6[%c128, %c0_39], %69 {strides = array<i32>} : memref<144x384xbf16, #tpu.memory_space<vmem>>, vector<16x384xbf16>,
    %c0_40 = arith.constant 0 : index
    %c0_41 = arith.constant 0 : index
    %71 = vector.load %arg2[%c0_40, %c0_41] : memref<32x144xbf16, #tpu.memory_space<vmem>>, vector<32x144xbf16>
    %c0_42 = arith.constant 0 : index
    %c0_43 = arith.constant 0 : index
    %72 = vector.load %arg6[%c0_42, %c0_43] : memref<144x384xbf16, #tpu.memory_space<vmem>>, vector<144x384xbf16>
    %cst_44 = arith.constant dense<0.000000e+00> : vector<32x384xf32>
    %73 = tpu.matmul %71, %72, %cst_44 {dimension_numbers = #tpu.dot_dimension_numbers<[1], [0], [0], [1], [0, 0, 1, 1], [], []>} : vector<32x144xbf16>, vector<144x384xbf16>, vector<32x384xf32> -> vector<32x384xf32>
    %c0_45 = arith.constant 0 : index
    %c0_46 = arith.constant 0 : index
    %74 = vector.load %arg3[%c0_45, %c0_46] : memref<32x1xf32, #tpu.memory_space<vmem>>, vector<32x1xf32>
    %75 = vector.broadcast %74 : vector<32x1xf32> to vector<32x384xf32>
    %76 = arith.addf %73, %75 : vector<32x384xf32>
    %77 = vector.extract_strided_slice %76 {offsets = [0, 0], sizes = [32, 240], strides = [1, 1]} : vector<32x384xf32> to vector<32x240xf32>
    %78 = vector.extract_strided_slice %77 {offsets = [0, 0], sizes = [16, 240], strides = [1, 1]} : vector<32x240xf32> to vector<16x240xf32>
    %cst_47 = arith.constant 0.000000e+00 : f32
    %79 = vector.broadcast %cst_47 : f32 to vector<16x240xf32>
    %80 = arith.maximumf %78, %79 : vector<16x240xf32>
    %81 = vector.extract_strided_slice %77 {offsets = [16, 0], sizes = [16, 240], strides = [1, 1]} : vector<32x240xf32> to vector<16x240xf32>
    %82 = arith.addf %80, %81 : vector<16x240xf32>
    %cst_48 = arith.constant 0.000000e+00 : f32
    %83 = vector.broadcast %cst_48 : f32 to vector<16x240xf32>
    %84 = arith.maximumf %82, %83 : vector<16x240xf32>
    %c0_49 = arith.constant 0 : index
    %c0_50 = arith.constant 0 : index
    %c0_51 = arith.constant 0 : index
    %85 = vector.load %arg4[%c0_49, %c0_50, %c0_51] : memref<1x16x240xf32, #tpu.memory_space<vmem>>, vector<1x16x240xf32>
    %86 = vector.shape_cast %85 : vector<1x16x240xf32> to vector<16x240xf32>
    %87 = vector.shape_cast %84 : vector<16x240xf32> to vector<1x16x240xf32>
    tpu.vector_store %arg4[%c0_49, %c0_50, %c0_51], %87 {strides = array<i32>} : memref<1x16x240xf32, #tpu.memory_space<vmem>>, vector<1x16x240xf32>,
    return
  }
  func.func @transform_0(%arg0: i32) -> (i32, i32, i32) {
    %c0_i32 = arith.constant 0 : i32
    %c0_i32_0 = arith.constant 0 : i32
    %c0_i32_1 = arith.constant 0 : i32
    return %arg0, %c0_i32, %c0_i32_0 : i32, i32, i32
  }
  func.func @transform_1(%arg0: i32) -> (i32, i32) {
    %c0_i32 = arith.constant 0 : i32
    %c0_i32_0 = arith.constant 0 : i32
    %c0_i32_1 = arith.constant 0 : i32
    return %c0_i32, %c0_i32_0 : i32, i32
  }
  func.func @transform_2(%arg0: i32) -> (i32, i32) {
    %c0_i32 = arith.constant 0 : i32
    %c0_i32_0 = arith.constant 0 : i32
    %c0_i32_1 = arith.constant 0 : i32
    return %c0_i32, %c0_i32_0 : i32, i32
  }
  func.func @transform_3(%arg0: i32) -> (i32, i32, i32) {
    %c0_i32 = arith.constant 0 : i32
    %c0_i32_0 = arith.constant 0 : i32
    %c0_i32_1 = arith.constant 0 : i32
    return %arg0, %c0_i32, %c0_i32_0 : i32, i32, i32
  }
}

</mosaic_0001>

<llo_original>
// kernel: model_forward.1
$region0: #{model_forward.1}
  #allocation0 [shape = 'u32[]', space=smem, size = 0x4, offset = 0x4, fixed_abs, tag = 'smem constant byte address 0x4 - core index']
  #allocation1 [shape = 'u32[144,128]{1,0:T(1,128)}', space=vmem, size = 0x12000, scoped, tag = 'internal scratch']
  #allocation2 [shape = 'bf16[16,512]{1,0:T(16,128)(2,1)}', space=vmem, size = 0x4000, scoped, tag = 'scratch operand']
  #allocation3 [shape = 'bf16[144,384]{1,0:T(16,128)(2,1)}', space=vmem, size = 0x1b000, scoped, tag = 'scratch operand']
  %s0 = inlined_call_operand.vmem [shape: f32[2,16,256], index: 0, kind: input, shape index: {}]
  %s1 = inlined_call_operand.vmem [shape: bf16[32,144], index: 1, kind: input, shape index: {}]
  %s2 = inlined_call_operand.vmem [shape: f32[32,1], index: 2, kind: input, shape index: {}]
  %s3 = inlined_call_operand.vmem [shape: f32[2,16,240], index: 3, kind: output, shape index: {}]
  %s4 = sld [smem:[#allocation0]]
  $region45: #{model_forward.1} parent=0
    _
  %s6 = ssub.s32 1, %s4
  %s7 = scalar_select 0, %s6, %s4
  loop: start=0, step=1, limit=4
  $region2: #{model_forward.1} parent=0 // loop_pre_header
    _
  $region3: #{model_forward.1} parent=0 // loop_header
    %s9 = sphi 0, %s13
    %p10 = scmp.ge.s32.totalorder %s9, 4
    %s19 = sphi 0, %s21
    %s22 = sphi 0, %s19
    %s23 = sphi 0, %s22
    %s39 = sphi 0, %s23
    %s43 = sphi 0, %s43
    %s45 = sphi 0, %s43
    %s46 = sphi 0, %s45
    %s60 = sphi 0, %s46
    %s64 = sphi 0, %s64
    %s66 = sphi 0, %s64
    %s67 = sphi 0, %s66
    %s81 = sphi 0, %s67
    %s87 = sphi 0, %s89
    %s90 = sphi 0, %s87
    %s91 = sphi 0, %s90
    %s107 = sphi 0, %s91
  $region4: #{model_forward.1} parent=0 // loop_header_branch
    %12 = sbr.rel (%p10) target = $region8
  $region5: #{model_forward.1} parent=0 // loop_body
    %s14 = ssub.s32 %s9, 1
    %s15 = ssub.s32 %s9, 2
    %s16 = sadd.s32 %s9, 1
    %s17 = ssub.s32 %s9, %s16
    %p18 = scmp.eq.s32.totalorder %s17, 0
    %s20 = sadd.s32 %s19, 1
    %s21 = scalar_select %p18, %s19, %s20
    %p24 = pneg %p18
    %p25 = scmp.eq.s32.totalorder %s9, 1
    %p26 = por %p24, %p25
    %p27 = scmp.ne.s32.totalorder %s19, %s22
    %p28 = scmp.eq.s32.totalorder %s9, 0
    %p29 = por %p27, %p28
    %p30 = scmp.ne.s32.totalorder %s19, %s22
    %p31 = scmp.eq.s32.totalorder %s14, 1
    %p32 = por %p30, %p31
    %p33 = scmp.ne.s32.totalorder %s22, %s23
    %p34 = scmp.eq.s32.totalorder %s14, 0
    %p35 = por %p33, %p34
    %p36 = scmp.ne.s32.totalorder %s22, %s23
    %p37 = scmp.eq.s32.totalorder %s15, 1
    %p38 = por %p36, %p37
    %p40 = scmp.ne.s32.totalorder %s23, %s39
    %p41 = scmp.eq.s32.totalorder %s15, 0
    %p42 = por %p40, %p41
    %s44 = sadd.s32 %s43, 1
    %p47 = scmp.eq.s32.totalorder %s9, 1
    %p48 = scmp.ne.s32.totalorder %s43, %s45
    %p49 = scmp.eq.s32.totalorder %s9, 0
    %p50 = por %p48, %p49
    %p51 = scmp.ne.s32.totalorder %s43, %s45
    %p52 = scmp.eq.s32.totalorder %s14, 1
    %p53 = por %p51, %p52
    %p54 = scmp.ne.s32.totalorder %s45, %s46
    %p55 = scmp.eq.s32.totalorder %s14, 0
    %p56 = por %p54, %p55
    %p57 = scmp.ne.s32.totalorder %s45, %s46
    %p58 = scmp.eq.s32.totalorder %s15, 1
    %p59 = por %p57, %p58
    %p61 = scmp.ne.s32.totalorder %s46, %s60
    %p62 = scmp.eq.s32.totalorder %s15, 0
    %p63 = por %p61, %p62
    %s65 = sadd.s32 %s64, 1
    %p68 = scmp.eq.s32.totalorder %s9, 1
    %p69 = scmp.ne.s32.totalorder %s64, %s66
    %p70 = scmp.eq.s32.totalorder %s9, 0
    %p71 = por %p69, %p70
    %p72 = scmp.ne.s32.totalorder %s64, %s66
    %p73 = scmp.eq.s32.totalorder %s14, 1
    %p74 = por %p72, %p73
    %p75 = scmp.ne.s32.totalorder %s66, %s67
    %p76 = scmp.eq.s32.totalorder %s14, 0
    %p77 = por %p75, %p76
    %p78 = scmp.ne.s32.totalorder %s66, %s67
    %p79 = scmp.eq.s32.totalorder %s15, 1
    %p80 = por %p78, %p79
    %p82 = scmp.ne.s32.totalorder %s67, %s81
    %p83 = scmp.eq.s32.totalorder %s15, 0
    %p84 = por %p82, %p83
    %s85 = ssub.s32 %s9, %s16
    %p86 = scmp.eq.s32.totalorder %s85, 0
    %s88 = sadd.s32 %s87, 1
    %s89 = scalar_select %p86, %s87, %s88
    %p92 = pneg %p86
    %p93 = scmp.eq.s32.totalorder %s9, 1
    %p94 = por %p92, %p93
    %p95 = scmp.ne.s32.totalorder %s87, %s90
    %p96 = scmp.eq.s32.totalorder %s9, 0
    %p97 = por %p95, %p96
    %p98 = scmp.ne.s32.totalorder %s87, %s90
    %p99 = scmp.eq.s32.totalorder %s14, 1
    %p100 = por %p98, %p99
    %p101 = scmp.ne.s32.totalorder %s90, %s91
    %p102 = scmp.eq.s32.totalorder %s14, 0
    %p103 = por %p101, %p102
    %p104 = scmp.ne.s32.totalorder %s90, %s91
    %p105 = scmp.eq.s32.totalorder %s15, 1
    %p106 = por %p104, %p105
    %p108 = scmp.ne.s32.totalorder %s91, %s107
    %p109 = scmp.eq.s32.totalorder %s15, 0
    %p110 = por %p108, %p109
    %p111 = scmp.le.s32.totalorder 1, %s9
    %p112 = scmp.lt.s32.totalorder %s9, 3
    %p113 = pnand %p111, %p112
    %p114 = pneg %p113
    // Predicated region
    $region9: #{model_forward.1} parent=5 // pred_check
      _
    $region10: #{model_forward.1} parent=5 // pred_check_branch
      %116 = sbr.rel (%p113) target = $region12
    $region11: #{model_forward.1} parent=5 // pred_region
      %s117 = ssub.s32 %s9, 1
      // Predicated region
      $region13: #{model_forward.1} parent=11 // pred_check
        %p118 = pneg %p56
      $region14: #{model_forward.1} parent=11 // pred_check_branch
        %120 = sbr.rel (%p118) target = $region16
      $region15: #{model_forward.1} parent=11 // pred_region
        _
      $region16: #{model_forward.1} parent=11 // pred_fallthru
        _
      // Predicated region
      $region17: #{model_forward.1} parent=11 // pred_check
        %p121 = pneg %p77
      $region18: #{model_forward.1} parent=11 // pred_check_branch
        %123 = sbr.rel (%p121) target = $region20
      $region19: #{model_forward.1} parent=11 // pred_region
        _
      $region20: #{model_forward.1} parent=11 // pred_fallthru
        _
    $region12: #{model_forward.1} parent=5 // pred_fallthru
      _
    %p124 = scmp.lt.s32.totalorder %s9, 2
    // Predicated region
    $region21: #{model_forward.1} parent=5 // pred_check
      %p125 = pneg %p124
    $region22: #{model_forward.1} parent=5 // pred_check_branch
      %127 = sbr.rel (%p125) target = $region24
    $region23: #{model_forward.1} parent=5 // pred_region
      // Predicated region
      $region25: #{model_forward.1} parent=23 // pred_check
        %p128 = pneg %p29
      $region26: #{model_forward.1} parent=23 // pred_check_branch
        %130 = sbr.rel (%p128) target = $region28
      $region27: #{model_forward.1} parent=23 // pred_region
        %p131 = scmp.lt.s32.totalorder %s9, 1
        %s132 = scalar_select %p131, %s9, 1
        %s133 = smul.addr %s132, 4
        %s134 = smul.addr %s133, 8
        %s135 = scalar_lea.vmem %s0, %s134
      $region28: #{model_forward.1} parent=23 // pred_fallthru
        _
    $region24: #{model_forward.1} parent=5 // pred_fallthru
      _
    %p136 = scmp.le.s32.totalorder 1, %s9
    %p137 = scmp.lt.s32.totalorder %s9, 3
    %p138 = pnand %p136, %p137
    %p139 = pneg %p138
    // Predicated region
    $region29: #{model_forward.1} parent=5 // pred_check
      _
    $region30: #{model_forward.1} parent=5 // pred_check_branch
      %141 = sbr.rel (%p138) target = $region32
    $region31: #{model_forward.1} parent=5 // pred_region
      %s142 = ssub.s32 %s9, 1
      %p143 = scmp.lt.s32.totalorder %s14, 1
      %s144 = scalar_select %p143, %s14, 1
      %s145 = smul.addr %s144, 4
      %s146 = smul.addr %s145, 8
      %s147 = scalar_lea.vmem %s0, %s146
      %p148 = pneg %p35
      %p149 = pneg %p32
      %p150 = pneg %p56
      %p151 = pneg %p53
      %p152 = pneg %p77
      %p153 = pneg %p74
      %p154 = pneg %p103
      %p155 = pneg %p100
      %p156 = scmp.lt.s32.totalorder %s14, 1
      %s157 = scalar_select %p156, %s14, 1
      %s158 = smul.addr %s157, 4
      %s159 = smul.addr %s158, 8
      %s160 = scalar_lea.vmem %s3, %s159
      %p161 = scmp.lt.s32.totalorder %s14, 1
      %s162 = scalar_select %p161, %s14, 1
      %s163 = smul.addr %s162, 4
      %s164 = smul.addr %s163, 8
      %s165 = scalar_lea.vmem %s0, %s164
      %p166 = scmp.lt.s32.totalorder %s14, 1
      %s167 = scalar_select %p166, %s14, 1
      %s168 = smul.addr %s167, 4
      %s169 = smul.addr %s168, 8
      %s170 = scalar_lea.vmem %s3, %s169
      %174 = vst [vmem:[#allocation2] sm:$0xff] 0
      %175 = vst [vmem:[#allocation2 + $0x8] sm:$0xff] 0
      %176 = vst [vmem:[#allocation2 + $0x10] sm:$0xff] 0
      %177 = vst [vmem:[#allocation2 + $0x18] sm:$0xff] 0
      %v178 = vld [vmem:[%s165] sm:$0xff]
      %v179 = vld [vmem:[%s165 + $0x8] sm:$0xff]
      %v180 = vld [vmem:[%s165 + $0x10] sm:$0xff]
      %v181 = vld [vmem:[%s165 + $0x18] sm:$0xff]
      %v182 = vpack.c.bf16 %v180, %v178
      %v183 = vpack.c.bf16 %v181, %v179
      %186 = vrot.lane.b32.xlu0 %v182, 17
      %v187 = vpop.permute.xlu0 %186
      %188 = vrot.lane.b32.xlu0 %v183, 17
      %v189 = vpop.permute.xlu0 %188
      %vm190 = vcmask 138240
      %v191 = vsel %vm190, %v187, %v189
      %vm195 = vcmask 1047688
      %196 = vst.msk [vmem:[#allocation2] sm:$0xff] %vm195, %v187
      %197 = vst [vmem:[#allocation2 + $0x8] sm:$0xff] %v191
      %vm198 = vcmask 138240
      %199 = vst.msk [vmem:[#allocation2 + $0x10] sm:$0xff] %vm198, %v189
      %v200 = vlaneseq
      %v201 = vand.u32 %v200, 127
      %v202 = vadd.s32 %v201, 128
      %v203 = vadd.s32 %v201, 256
      %vm204 = vcmp.lt.s32.totalorder %v201, 0
      %v205 = vsub.s32 0, %v201
      %v206 = vsel %vm204, %v205, %v201
      %v207 = vmul.u32.u64.compose %v206, 2863311531
      %v208 = vextract.low.u32 %v207
      %v209 = vextract.high.u32 %v207
      %v210 = vshrl.u32 %v209, 8
      %v211 = vmul.u32 %v210, 384
      %v212 = vsub.s32 %v206, %v211
      %v213 = vsub.s32 0, %v212
      %v214 = vsel %vm204, %v213, %v212
      %vm215 = vcmp.lt.s32.totalorder %v202, 0
      %v216 = vsub.s32 0, %v202
      %v217 = vsel %vm215, %v216, %v202
      %v218 = vmul.u32.u64.compose %v217, 2863311531
      %v219 = vextract.low.u32 %v218
      %v220 = vextract.high.u32 %v218
      %v221 = vshrl.u32 %v220, 8
      %v222 = vmul.u32 %v221, 384
      %v223 = vsub.s32 %v217, %v222
      %v224 = vsub.s32 0, %v223
      %v225 = vsel %vm215, %v224, %v223
      %vm226 = vcmp.lt.s32.totalorder %v203, 0
      %v227 = vsub.s32 0, %v203
      %v228 = vsel %vm226, %v227, %v203
      %v229 = vmul.u32.u64.compose %v228, 2863311531
      %v230 = vextract.low.u32 %v229
      %v231 = vextract.high.u32 %v229
      %v232 = vshrl.u32 %v231, 8
      %v233 = vmul.u32 %v232, 384
      %v234 = vsub.s32 %v228, %v233
      %v235 = vsub.s32 0, %v234
      %v236 = vsel %vm226, %v235, %v234
      %vm237 = vcmp.ne.s32.totalorder %v214, 0
      %vm238 = vcmp.ne.s32.totalorder %v225, 0
      %vm239 = vcmp.ne.s32.totalorder %v236, 0
      %vm240 = vcmp.lt.s32.totalorder %v214, 0
      %vm241 = vcmp.lt.s32.totalorder %v225, 0
      %vm242 = vcmp.lt.s32.totalorder %v236, 0
      %vm243 = vmand %vm240, %vm237
      %vm244 = vmand %vm241, %vm238
      %vm245 = vmand %vm242, %vm239
      %v246 = vadd.s32 %v214, 384
      %v247 = vadd.s32 %v225, 384
      %v248 = vadd.s32 %v236, 384
      %v249 = vsel %vm243, %v246, %v214
      %v250 = vsel %vm244, %v247, %v225
      %v251 = vsel %vm245, %v248, %v236
      %vm252 = vcmp.lt.s32.totalorder %v249, 0
      %v253 = vsub.s32 0, %v249
      %v254 = vsel %vm252, %v253, %v249
      %v255 = vshrl.u32 %v254, 4
      %v256 = vand.u32 %v254, 15
      %v257 = vsub.s32 0, %v256
      %v258 = vsel %vm252, %v257, %v256
      %vm259 = vcmp.lt.s32.totalorder %v250, 0
      %v260 = vsub.s32 0, %v250
      %v261 = vsel %vm259, %v260, %v250
      %v262 = vshrl.u32 %v261, 4
      %v263 = vand.u32 %v261, 15
      %v264 = vsub.s32 0, %v263
      %v265 = vsel %vm259, %v264, %v263
      %vm266 = vcmp.lt.s32.totalorder %v251, 0
      %v267 = vsub.s32 0, %v251
      %v268 = vsel %vm266, %v267, %v251
      %v269 = vshrl.u32 %v268, 4
      %v270 = vand.u32 %v268, 15
      %v271 = vsub.s32 0, %v270
      %v272 = vsel %vm266, %v271, %v270
      %vm273 = vcmp.ne.s32.totalorder %v258, 0
      %vm274 = vcmp.ne.s32.totalorder %v265, 0
      %vm275 = vcmp.ne.s32.totalorder %v272, 0
      %vm276 = vcmp.lt.s32.totalorder %v258, 0
      %vm277 = vcmp.lt.s32.totalorder %v265, 0
      %vm278 = vcmp.lt.s32.totalorder %v272, 0
      %vm279 = vmand %vm276, %vm273
      %vm280 = vmand %vm277, %vm274
      %vm281 = vmand %vm278, %vm275
      %v282 = vadd.s32 %v258, 16
      %v283 = vadd.s32 %v265, 16
      %v284 = vadd.s32 %v272, 16
      %v285 = vsel %vm279, %v282, %v258
      %v286 = vsel %vm280, %v283, %v265
      %v287 = vsel %vm281, %v284, %v272
      %vm288 = vcmp.eq.s32.totalorder %v285, 0
      %vm289 = vcmp.eq.s32.totalorder %v286, 0
      %vm290 = vcmp.eq.s32.totalorder %v287, 0
      %v291 = vld [vmem:[#allocation2] sm:$0xff]
      %v292 = vld [vmem:[#allocation2 + $0x8] sm:$0xff]
      %v293 = vld [vmem:[#allocation2 + $0x10] sm:$0xff]
      %v294 = vsel %vm288, 1, 0
      %v295 = vsel %vm289, 1, 0
      %v296 = vsel %vm290, 1, 0
      %vm297 = vcmp.eq.s32.totalorder %v294, 1
      %vm298 = vcmp.eq.s32.totalorder %v295, 1
      %vm299 = vcmp.eq.s32.totalorder %v296, 1
      %vm300 = vmpackc.low %vm298, %vm297
      %vm301 = vmpackc.low %vm299, %vm299
      %v302 = vsel %vm300, 65537, 0
      %v303 = vsel %vm301, 65537, 0
      %v304 = vlaneseq
      %v305 = vshrl.u32 %v304, 7
      %v306 = vsub.s32 0, %v305
      %v307 = vrot.slane %v302, %v306
      %v308 = vlaneseq
      %v309 = vshrl.u32 %v308, 7
      %v310 = vsub.s32 4, %v309
      %v311 = vrot.slane %v302, %v310
      %v312 = vlaneseq
      %v313 = vshrl.u32 %v312, 7
      %v314 = vsub.s32 0, %v313
      %v315 = vrot.slane %v303, %v314
      %vm316 = vcmp.ne.s16.totalorder %v307, 0
      %vm317 = vcmp.ne.s16.totalorder %v311, 0
      %vm318 = vcmp.ne.s16.totalorder %v315, 0
      %v319 = vsel %vm316, 0, %v291
      %v320 = vsel %vm317, 0, %v292
      %v321 = vsel %vm318, 0, %v293
      %322 = vst [vmem:[#allocation3] sm:$0xff] %v319
      %323 = vst [vmem:[#allocation3 + $0x8] sm:$0xff] %v320
      %324 = vst [vmem:[#allocation3 + $0x10] sm:$0xff] %v321
      %v325 = vld [vmem:[#allocation2] sm:$0xff]
      %v326 = vld [vmem:[#allocation2 + $0x8] sm:$0xff]
      %v327 = vld [vmem:[#allocation2 + $0x10] sm:$0xff]
      %v328 = vld [vmem:[#allocation2 + $0x18] sm:$0xff]
      %333 = vrot.lane.b32.xlu0 %v325, 127
      %v334 = vpop.permute.xlu0 %333
      %335 = vrot.lane.b32.xlu0 %v326, 127
      %v336 = vpop.permute.xlu0 %335
      %337 = vrot.lane.b32.xlu0 %v327, 127
      %v338 = vpop.permute.xlu0 %337
      %339 = vrot.lane.b32.xlu0 %v328, 127
      %v340 = vpop.permute.xlu0 %339
      %vm341 = vcmask 1039360
      %v342 = vsel %vm341, %v334, %v336
      %v343 = vsel %vm341, %v336, %v338
      %v344 = vsel %vm341, %v338, %v340
      %348 = vst [vmem:[#allocation3 + $0x18] sm:$0xff] %v342
      %349 = vst [vmem:[#allocation3 + $0x20] sm:$0xff] %v343
      %350 = vst [vmem:[#allocation3 + $0x28] sm:$0xff] %v344
      %v351 = vld [vmem:[#allocation2] sm:$0xff]
      %v352 = vld [vmem:[#allocation2 + $0x8] sm:$0xff]
      %v353 = vld [vmem:[#allocation2 + $0x10] sm:$0xff]
      %v354 = vld [vmem:[#allocation2 + $0x18] sm:$0xff]
      %359 = vrot.lane.b32.xlu0 %v351, 126
      %v360 = vpop.permute.xlu0 %359
      %361 = vrot.lane.b32.xlu0 %v352, 126
      %v362 = vpop.permute.xlu0 %361
      %363 = vrot.lane.b32.xlu0 %v353, 126
      %v364 = vpop.permute.xlu0 %363
      %365 = vrot.lane.b32.xlu0 %v354, 126
      %v366 = vpop.permute.xlu0 %365
      %vm367 = vcmask 1031168
      %v368 = vsel %vm367, %v360, %v362
      %v369 = vsel %vm367, %v362, %v364
      %v370 = vsel %vm367, %v364, %v366
      %374 = vst [vmem:[#allocation3 + $0x30] sm:$0xff] %v368
      %375 = vst [vmem:[#allocation3 + $0x38] sm:$0xff] %v369
      %376 = vst [vmem:[#allocation3 + $0x40] sm:$0xff] %v370
      %v377 = vld [vmem:[#allocation2] sm:$0xff]
      %v378 = vld [vmem:[#allocation2 + $0x8] sm:$0xff]
      %v379 = vld [vmem:[#allocation2 + $0x10] sm:$0xff]
      %v380 = vld [vmem:[#allocation2 + $0x18] sm:$0xff]
      %381 = vrot.lane.b32.xlu0 %v307, 16
      %v382 = vpop.permute.xlu0 %381
      %383 = vrot.lane.b32.xlu0 %v311, 16
      %v384 = vpop.permute.xlu0 %383
      %385 = vrot.lane.b32.xlu0 %v315, 16
      %v386 = vpop.permute.xlu0 %385
      %vm387 = vcmask 130048
      %v388 = vsel %vm387, %v382, %v384
      %v389 = vsel %vm387, %v384, %v386
      %vm390 = vcmp.ne.s16.totalorder %v382, 0
      %vm391 = vcmp.ne.s16.totalorder %v388, 0
      %vm392 = vcmp.ne.s16.totalorder %v389, 0
      %vm393 = vcmp.ne.s16.totalorder %v386, 0
      %v394 = vsel %vm390, 0, %v377
      %v395 = vsel %vm391, 0, %v378
      %v396 = vsel %vm392, 0, %v379
      %v397 = vsel %vm393, 0, %v380
      %402 = vrot.lane.b32.xlu0 %v394, 112
      %v403 = vpop.permute.xlu0 %402
      %404 = vrot.lane.b32.xlu0 %v395, 112
      %v405 = vpop.permute.xlu0 %404
      %406 = vrot.lane.b32.xlu0 %v396, 112
      %v407 = vpop.permute.xlu0 %406
      %408 = vrot.lane.b32.xlu0 %v397, 112
      %v409 = vpop.permute.xlu0 %408
      %vm410 = vcmask 916480
      %v411 = vsel %vm410, %v403, %v405
      %v412 = vsel %vm410, %v405, %v407
      %v413 = vsel %vm410, %v407, %v409
      %417 = vst [vmem:[#allocation3 + $0x48] sm:$0xff] %v411
      %418 = vst [vmem:[#allocation3 + $0x50] sm:$0xff] %v412
      %419 = vst [vmem:[#allocation3 + $0x58] sm:$0xff] %v413
      %v420 = vld [vmem:[#allocation2] sm:$0xff]
      %v421 = vld [vmem:[#allocation2 + $0x8] sm:$0xff]
      %v422 = vld [vmem:[#allocation2 + $0x10] sm:$0xff]
      %v423 = vld [vmem:[#allocation2 + $0x18] sm:$0xff]
      %428 = vrot.lane.b32.xlu0 %v420, 111
      %v429 = vpop.permute.xlu0 %428
      %430 = vrot.lane.b32.xlu0 %v421, 111
      %v431 = vpop.permute.xlu0 %430
      %432 = vrot.lane.b32.xlu0 %v422, 111
      %v433 = vpop.permute.xlu0 %432
      %434 = vrot.lane.b32.xlu0 %v423, 111
      %v435 = vpop.permute.xlu0 %434
      %vm436 = vcmask 908288
      %v437 = vsel %vm436, %v429, %v431
      %v438 = vsel %vm436, %v431, %v433
      %v439 = vsel %vm436, %v433, %v435
      %443 = vst [vmem:[#allocation3 + $0x60] sm:$0xff] %v437
      %444 = vst [vmem:[#allocation3 + $0x68] sm:$0xff] %v438
      %445 = vst [vmem:[#allocation3 + $0x70] sm:$0xff] %v439
      %v446 = vld [vmem:[#allocation2] sm:$0xff]
      %v447 = vld [vmem:[#allocation2 + $0x8] sm:$0xff]
      %v448 = vld [vmem:[#allocation2 + $0x10] sm:$0xff]
      %v449 = vld [vmem:[#allocation2 + $0x18] sm:$0xff]
      %454 = vrot.lane.b32.xlu0 %v446, 110
      %v455 = vpop.permute.xlu0 %454
      %456 = vrot.lane.b32.xlu0 %v447, 110
      %v457 = vpop.permute.xlu0 %456
      %458 = vrot.lane.b32.xlu0 %v448, 110
      %v459 = vpop.permute.xlu0 %458
      %460 = vrot.lane.b32.xlu0 %v449, 110
      %v461 = vpop.permute.xlu0 %460
      %vm462 = vcmask 900096
      %v463 = vsel %vm462, %v455, %v457
      %v464 = vsel %vm462, %v457, %v459
      %v465 = vsel %vm462, %v459, %v461
      %469 = vst [vmem:[#allocation3 + $0x78] sm:$0xff] %v463
      %470 = vst [vmem:[#allocation3 + $0x80] sm:$0xff] %v464
      %471 = vst [vmem:[#allocation3 + $0x88] sm:$0xff] %v465
      %v472 = vld [vmem:[#allocation2] sm:$0xff]
      %v473 = vld [vmem:[#allocation2 + $0x8] sm:$0xff]
      %v474 = vld [vmem:[#allocation2 + $0x10] sm:$0xff]
      %v475 = vld [vmem:[#allocation2 + $0x18] sm:$0xff]
      %476 = vrot.lane.b32.xlu0 %v307, 32
      %v477 = vpop.permute.xlu0 %476
      %478 = vrot.lane.b32.xlu0 %v311, 32
      %v479 = vpop.permute.xlu0 %478
      %480 = vrot.lane.b32.xlu0 %v315, 32
      %v481 = vpop.permute.xlu0 %480
      %vm482 = vcmask 261120
      %v483 = vsel %vm482, %v477, %v479
      %v484 = vsel %vm482, %v479, %v481
      %vm485 = vcmp.ne.s16.totalorder %v477, 0
      %vm486 = vcmp.ne.s16.totalorder %v483, 0
      %vm487 = vcmp.ne.s16.totalorder %v484, 0
      %vm488 = vcmp.ne.s16.totalorder %v481, 0
      %v489 = vsel %vm485, 0, %v472
      %v490 = vsel %vm486, 0, %v473
      %v491 = vsel %vm487, 0, %v474
      %v492 = vsel %vm488, 0, %v475
      %497 = vrot.lane.b32.xlu0 %v489, 96
      %v498 = vpop.permute.xlu0 %497
      %499 = vrot.lane.b32.xlu0 %v490, 96
      %v500 = vpop.permute.xlu0 %499
      %501 = vrot.lane.b32.xlu0 %v491, 96
      %v502 = vpop.permute.xlu0 %501
      %503 = vrot.lane.b32.xlu0 %v492, 96
      %v504 = vpop.permute.xlu0 %503
      %vm505 = vcmask 785408
      %v506 = vsel %vm505, %v498, %v500
      %v507 = vsel %vm505, %v500, %v502
      %v508 = vsel %vm505, %v502, %v504
      %512 = vst [vmem:[#allocation3 + $0x90] sm:$0xff] %v506
      %513 = vst [vmem:[#allocation3 + $0x98] sm:$0xff] %v507
      %514 = vst [vmem:[#allocation3 + $0xa0] sm:$0xff] %v508
      %v515 = vld [vmem:[#allocation2] sm:$0xff]
      %v516 = vld [vmem:[#allocation2 + $0x8] sm:$0xff]
      %v517 = vld [vmem:[#allocation2 + $0x10] sm:$0xff]
      %v518 = vld [vmem:[#allocation2 + $0x18] sm:$0xff]
      %523 = vrot.lane.b32.xlu0 %v515, 95
      %v524 = vpop.permute.xlu0 %523
      %525 = vrot.lane.b32.xlu0 %v516, 95
      %v526 = vpop.permute.xlu0 %525
      %527 = vrot.lane.b32.xlu0 %v517, 95
      %v528 = vpop.permute.xlu0 %527
      %529 = vrot.lane.b32.xlu0 %v518, 95
      %v530 = vpop.permute.xlu0 %529
      %vm531 = vcmask 777216
      %v532 = vsel %vm531, %v524, %v526
      %v533 = vsel %vm531, %v526, %v528
      %v534 = vsel %vm531, %v528, %v530
      %538 = vst [vmem:[#allocation3 + $0xa8] sm:$0xff] %v532
      %539 = vst [vmem:[#allocation3 + $0xb0] sm:$0xff] %v533
      %540 = vst [vmem:[#allocation3 + $0xb8] sm:$0xff] %v534
      %v541 = vld [vmem:[#allocation2] sm:$0xff]
      %v542 = vld [vmem:[#allocation2 + $0x8] sm:$0xff]
      %v543 = vld [vmem:[#allocation2 + $0x10] sm:$0xff]
      %v544 = vld [vmem:[#allocation2 + $0x18] sm:$0xff]
      %549 = vrot.lane.b32.xlu0 %v541, 94
      %v550 = vpop.permute.xlu0 %549
      %551 = vrot.lane.b32.xlu0 %v542, 94
      %v552 = vpop.permute.xlu0 %551
      %553 = vrot.lane.b32.xlu0 %v543, 94
      %v554 = vpop.permute.xlu0 %553
      %555 = vrot.lane.b32.xlu0 %v544, 94
      %v556 = vpop.permute.xlu0 %555
      %vm557 = vcmask 769024
      %v558 = vsel %vm557, %v550, %v552
      %v559 = vsel %vm557, %v552, %v554
      %v560 = vsel %vm557, %v554, %v556
      %564 = vst [vmem:[#allocation3 + $0xc0] sm:$0xff] %v558
      %565 = vst [vmem:[#allocation3 + $0xc8] sm:$0xff] %v559
      %566 = vst [vmem:[#allocation3 + $0xd0] sm:$0xff] %v560
      %v567 = vld [vmem:[%s1] sm:$0xff]
      %v568 = vld [vmem:[%s1 + $0x8] sm:$0xff]
      %v569 = vld [vmem:[%s1 + $0x10] sm:$0xff]
      %v570 = vld [vmem:[%s1 + $0x18] sm:$0xff]
      %v571 = vld [vmem:[#allocation3] sm:$0xff]
      %v572 = vld [vmem:[#allocation3 + $0x8] sm:$0xff]
      %v573 = vld [vmem:[#allocation3 + $0x18] sm:$0xff]
      %v574 = vld [vmem:[#allocation3 + $0x20] sm:$0xff]
      %v575 = vld [vmem:[#allocation3 + $0x30] sm:$0xff]
      %v576 = vld [vmem:[#allocation3 + $0x38] sm:$0xff]
      %v577 = vld [vmem:[#allocation3 + $0x48] sm:$0xff]
      %v578 = vld [vmem:[#allocation3 + $0x50] sm:$0xff]
      %v579 = vld [vmem:[#allocation3 + $0x60] sm:$0xff]
      %v580 = vld [vmem:[#allocation3 + $0x68] sm:$0xff]
      %v581 = vld [vmem:[#allocation3 + $0x78] sm:$0xff]
      %v582 = vld [vmem:[#allocation3 + $0x80] sm:$0xff]
      %v583 = vld [vmem:[#allocation3 + $0x90] sm:$0xff]
      %v584 = vld [vmem:[#allocation3 + $0x98] sm:$0xff]
      %v585 = vld [vmem:[#allocation3 + $0xa8] sm:$0xff]
      %v586 = vld [vmem:[#allocation3 + $0xb0] sm:$0xff]
      %v587 = vld [vmem:[#allocation3 + $0xc0] sm:$0xff]
      %v588 = vld [vmem:[#allocation3 + $0xc8] sm:$0xff]
      %v589 = vld [vmem:[%s2] sm:$0xff]
      %v590 = vld [vmem:[%s2 + $0x8] sm:$0xff]
      %v591 = vld [vmem:[%s2 + $0x10] sm:$0xff]
      %v592 = vld [vmem:[%s2 + $0x18] sm:$0xff]
      %594 = vset.pattern.permute.xlu0 0
      %595 = vperm.xlu0 %594, %v589
      %v596 = vpop.permute.xlu0 %595
      %599 = vset.pattern.permute.xlu0 0
      %600 = vperm.xlu0 %599, %v590
      %v601 = vpop.permute.xlu0 %600
      %604 = vset.pattern.permute.xlu0 0
      %605 = vperm.xlu0 %604, %v591
      %v606 = vpop.permute.xlu0 %605
      %609 = vset.pattern.permute.xlu0 0
      %610 = vperm.xlu0 %609, %v592
      %v611 = vpop.permute.xlu0 %610
      %v617 = vunpack.c.l.b16 %v567
      %v618 = vunpack.c.h.b16 %v567
      %v619 = vunpack.c.l.b16 %v568
      %v620 = vunpack.c.h.b16 %v568
      %v621 = vunpack.c.l.b16 %v569
      %v622 = vunpack.c.h.b16 %v569
      %v623 = vunpack.c.l.b16 %v570
      %v624 = vunpack.c.h.b16 %v570
      %v625 = vpack.c.b16 %v619, %v617
      %v626 = vpack.c.b16 %v620, %v618
      %v627 = vpack.c.b16 %v623, %v621
      %v628 = vpack.c.b16 %v624, %v622
      %vm631 = vcmask 130048
      %v633 = vsel %vm631, %v626, 0
      %v636 = vsel %vm631, %v628, 0
      %638 = vmatprep.subr.bf16.mxu0 %v572
      %639 = vmatpush1.bf16.msra.mxu0 %v571
      %640 = vmatprep.subr.bf16.mxu0 %v574
      %641 = vmatpush1.bf16.msra.mxu0 %v573
      %642 = vmatprep.subr.bf16.mxu0 %v576
      %643 = vmatpush1.bf16.msra.mxu0 %v575
      %644 = vmatprep.subr.bf16.mxu0 %v578
      %645 = vmatpush1.bf16.msra.mxu0 %v577
      %646 = vmatprep.subr.bf16.mxu0 %v580
      %647 = vmatpush1.bf16.msra.mxu0 %v579
      %648 = vmatprep.subr.bf16.mxu0 %v582
      %649 = vmatpush1.bf16.msra.mxu0 %v581
      %650 = vmatprep.subr.bf16.mxu0 %v584
      %651 = vmatpush1.bf16.msra.mxu0 %v583
      %652 = vmatprep.subr.bf16.mxu0 %v586
      %653 = vmatpush1.bf16.msra.mxu0 %v585
      %654 = vmatprep.subr.bf16.mxu0 %v588
      %655 = vmatpush1.bf16.msra.mxu0 %v587
      %656 = vmatprep.subr.bf16.mxu0 0
      %657 = vmatpush1.bf16.msra.mxu0 0
      %658 = vmatprep.subr.bf16.mxu0 0
      %659 = vmatpush1.bf16.msra.mxu0 0
      %660 = vmatprep.subr.bf16.mxu0 0
      %661 = vmatpush1.bf16.msra.mxu0 0
      %662 = vmatprep.subr.bf16.mxu0 0
      %663 = vmatpush1.bf16.msra.mxu0 0
      %664 = vmatprep.subr.bf16.mxu0 0
      %665 = vmatpush1.bf16.msra.mxu0 0
      %666 = vmatprep.subr.bf16.mxu0 0
      %667 = vmatpush1.bf16.msra.mxu0 0
      %668 = vmatprep.subr.bf16.mxu0 0
      %669 = vmatpush1.bf16.msra.mxu0 0
      %670 = vmatprep.mubr.bf16.mxu0 %v633
      %671 = vmatmul.mubr.bf16.gmra.mrb[0].mxu0 %v625
      %v672 = vpop.f32.mrb[0].mxu0
      %v673 = vadd.f32 %v596, %v672
      %v674 = vpop.f32.mrb[0].mxu0
      %v675 = vadd.f32 %v596, %v674
      %v676 = vpop.f32.mrb[0].mxu0
      %v677 = vadd.f32 %v601, %v676
      %v678 = vpop.f32.mrb[0].mxu0
      %v679 = vadd.f32 %v601, %v678
      %680 = vmatprep.mubr.bf16.mxu0 %v636
      %681 = vmatmul.mubr.bf16.gmra.mrb[0].mxu0 %v627
      %v682 = vpop.f32.mrb[0].mxu0
      %v683 = vadd.f32 %v606, %v682
      %v684 = vpop.f32.mrb[0].mxu0
      %v685 = vadd.f32 %v606, %v684
      %v686 = vpop.f32.mrb[0].mxu0
      %v687 = vadd.f32 %v611, %v686
      %v688 = vpop.f32.mrb[0].mxu0
      %v689 = vadd.f32 %v611, %v688
      %690 = vdwg.mxu0
      %v691 = vmax.f32 %v673, 0.0
      %v692 = vmax.f32 %v675, 0.0
      %v693 = vmax.f32 %v677, 0.0
      %v694 = vmax.f32 %v679, 0.0
      %v695 = vadd.f32 %v691, %v683
      %v696 = vadd.f32 %v692, %v685
      %v697 = vadd.f32 %v693, %v687
      %v698 = vadd.f32 %v694, %v689
      %v699 = vmax.f32 %v695, 0.0
      %v700 = vmax.f32 %v696, 0.0
      %v701 = vmax.f32 %v697, 0.0
      %v702 = vmax.f32 %v698, 0.0
      %703 = vst [vmem:[%s170] sm:$0xff] %v699
      %vm704 = vcmask 916480
      %705 = vst.msk [vmem:[%s170 + $0x8] sm:$0xff] %vm704, %v700
      %706 = vst [vmem:[%s170 + $0x10] sm:$0xff] %v701
      %707 = vst.msk [vmem:[%s170 + $0x18] sm:$0xff] %vm704, %v702
      %p708 = scmp.lt.s32.totalorder %s14, 1
      %s709 = scalar_select %p708, %s14, 1
      %s710 = smul.addr %s709, 4
      %s711 = smul.addr %s710, 8
      %s712 = scalar_lea.vmem %s3, %s711
      // Predicated region
      $region33: #{model_forward.1} parent=31 // pred_check
        %p713 = pneg %p100
      $region34: #{model_forward.1} parent=31 // pred_check_branch
        %715 = sbr.rel (%p713) target = $region36
      $region35: #{model_forward.1} parent=31 // pred_region
        _
      $region36: #{model_forward.1} parent=31 // pred_fallthru
        _
    $region32: #{model_forward.1} parent=5 // pred_fallthru
      _
    %p716 = scmp.le.s32.totalorder 2, %s9
    // Predicated region
    $region37: #{model_forward.1} parent=5 // pred_check
      %p717 = pneg %p716
    $region38: #{model_forward.1} parent=5 // pred_check_branch
      %719 = sbr.rel (%p717) target = $region40
    $region39: #{model_forward.1} parent=5 // pred_region
      %s720 = ssub.s32 %s9, 2
      // Predicated region
      $region41: #{model_forward.1} parent=39 // pred_check
        %p721 = pneg %p106
      $region42: #{model_forward.1} parent=39 // pred_check_branch
        %723 = sbr.rel (%p721) target = $region44
      $region43: #{model_forward.1} parent=39 // pred_region
        %p724 = scmp.lt.s32.totalorder %s15, 1
        %s725 = scalar_select %p724, %s15, 1
        %s726 = smul.addr %s725, 4
        %s727 = smul.addr %s726, 8
        %s728 = scalar_lea.vmem %s3, %s727
      $region44: #{model_forward.1} parent=39 // pred_fallthru
        _
    $region40: #{model_forward.1} parent=5 // pred_fallthru
      _
  $region6: #{model_forward.1} parent=0 // loop_footer
    %s13 = sadd.s32 1, %s9
  $region7: #{model_forward.1} parent=0 // loop_footer_branch
    %8 = sbr.rel target = $region3
  $region8: #{model_forward.1} parent=0 // loop_exit
    _

</llo_original>
